<compile_context>
chip_gen: v7x
topology: tpu7x:2x2x1
jax: 0.10.0
libtpu: 0.0.40
codegen_flags: <defaults>
</compile_context>

<pallas_src>
import functools

import jax
import jax.numpy as jnp
from jax.experimental import pallas as pl
from jax.experimental.pallas import tpu as pltpu


# -----------------------------------------------------------------------------
# Parameter construction (plain-JAX glue; matches module __init__ shapes)
# -----------------------------------------------------------------------------
def quaternion_conv_init(key, in_q, out_q, kh, kw):
    """Deterministic quaternion-flavored init of the 4 components (Parcollet-style)."""
    shape = (in_q, out_q, kh, kw)  # ConvTranspose2d weight layout (I, O, KH, KW)
    fan_in = in_q * kh * kw
    fan_out = out_q * kh * kw
    sigma = 1.0 / jnp.sqrt(2.0 * (fan_in + fan_out))
    k1, k2, k3 = jax.random.split(key, 3)
    modulus = sigma * jax.random.uniform(k1, shape, minval=0.0, maxval=1.0)
    phase = jax.random.uniform(k2, shape, minval=-jnp.pi, maxval=jnp.pi)
    v = jax.random.normal(k3, (3,) + shape)
    v = v / (jnp.sqrt(jnp.sum(v * v, axis=0, keepdims=True)) + 1e-8)
    r = modulus * jnp.cos(phase)
    i = modulus * v[0] * jnp.sin(phase)
    j = modulus * v[1] * jnp.sin(phase)
    k = modulus * v[2] * jnp.sin(phase)
    return r, i, j, k


def quaternion_real_repr(r, i, j, k):
    """QuaternionTensor._real_repr: 4x4 Hamilton block matrix over (dim0, dim1)."""
    row0 = jnp.concatenate([r, -i, -j, -k], axis=1)
    row1 = jnp.concatenate([i, r, -k, j], axis=1)
    row2 = jnp.concatenate([j, k, r, -i], axis=1)
    row3 = jnp.concatenate([k, -j, i, r], axis=1)
    return jnp.concatenate([row0, row1, row2, row3], axis=0)


# -----------------------------------------------------------------------------
# Pallas kernel: KH accumulated lane-dense MXU dots per output-row tile
# -----------------------------------------------------------------------------
def _qconv_transpose_kernel(x_ref, w_ref, b_ref, o_ref, *, KH, dh, TOH):
    # x_ref: (Hp, W*Cin)        H-dilated+padded input, (W, Cin) folded on lanes;
    #                           block index depends only on n -> fetched once per n.
    # w_ref: (KH, W*Cin, OWC)   Toeplitz weight (W stride/pad/dilation + kh-flip baked in).
    # b_ref: (1, OWC)           bias tiled over OW (lane-packed like the output).
    # o_ref: (TOH, OWC)         lane-packed output tile: column = ow*Cout + co.
    i = pl.program_id(1)
    row0 = pl.multiple_of(i * TOH, TOH)
    acc = jnp.zeros(o_ref.shape, jnp.float32)
    for khf in range(KH):  # static, small loop over H taps
        lhs = x_ref[pl.ds(row0 + khf * dh, TOH), :]          # (TOH, W*Cin) lane-dense
        acc = acc + jnp.dot(lhs, w_ref[khf], preferred_element_type=jnp.float32)
    o_ref[...] = (acc + b_ref[...]).astype(o_ref.dtype)


def _pick_row_tile(oh, owc_pad):
    """Output-row tile: as many rows as fit a ~2 MiB f32 output tile, capped at 1024."""
    budget_rows = max(8, (2 * 1024 * 1024) // (owc_pad * 4))
    toh = min(1024, budget_rows)
    if oh <= toh:
        return oh, oh                      # single tile; block == full dim (layout-exempt)
    toh = max(8, (toh // 8) * 8)           # keep the (8,128) sublane rule for tiled outputs
    oh_pad = toh * pl.cdiv(oh, toh)        # cdiv grid via output-row padding (no ragged tail)
    return toh, oh_pad


def _vmem_limit_bytes():
    """Generation-aware scoped-VMEM limit (~48 MiB on v7x, ~96 MiB on v5e/v6e)."""
    cap = 64 * 1024 * 1024
    try:
        cap = int(getattr(pltpu.get_tpu_info(), "vmem_capacity_bytes", cap))
    except Exception:
        pass
    return int(min(100 * 1024 * 1024, max(32 * 1024 * 1024, (cap * 3) // 4)))


@functools.partial(
    jax.jit,
    static_argnames=("stride", "padding", "output_padding", "dilation", "compute_dtype"),
)
def qconv_transpose2d_forward(x_nchw, weight_ioxy, bias, *, stride=1, padding=0,
                              output_padding=0, dilation=1,
                              compute_dtype=jnp.float32):
    """Forward of QAutogradConvTranspose2d (groups=1, spinor=False).

    x: (N, Cin, H, W), weight: (Cin, Cout, KH, KW) -> (N, Cout, OH, OW),
    matching torch.nn.functional.conv_transpose2d.
    """
    # TODO(synk): groups > 1 and spinor=True (_real_rot_repr) are not implemented.
    N, Cin, H, W = x_nchw.shape
    wCin, Cout, KH, KW = weight_ioxy.shape
    assert wCin == Cin, "weight/in-channel mismatch"
    s, p, op, d = int(stride), int(padding), int(output_padding), int(dilation)
    assert op < max(s, d), "output_padding must be smaller than stride (or dilation)"
    pad_lo_h = d * (KH - 1) - p
    # TODO(synk): padding > dilation*(kernel-1) along H needs a crop of the dilated input.
    assert pad_lo_h >= 0

    OH = (H - 1) * s - 2 * p + d * (KH - 1) + op + 1
    OW = (W - 1) * s - 2 * p + d * (KW - 1) + op + 1

    WC = W * Cin                        # input row: (W, Cin) folded onto the lane axis
    OWC = OW * Cout                     # output row: (OW, Cout) folded onto the lane axis
    OWC_pad = 128 * pl.cdiv(OWC, 128)   # lane-dense stores (demo: 32*8 = 256 -> no pad)
    TOH, OH_pad = _pick_row_tile(OH, OWC_pad)

    # --- input: zero-dilate along H only; W stride/pad/dilation live in the Toeplitz weight
    Hd = (H - 1) * s + 1
    Hp = OH_pad + (KH - 1) * d          # exactly the rows the last output-row tile needs
    x_rows = jnp.transpose(x_nchw, (0, 2, 3, 1)).reshape(N, H, WC).astype(compute_dtype)
    xp = jnp.zeros((N, Hp, WC), compute_dtype)
    xp = xp.at[:, pad_lo_h:pad_lo_h + Hd:s, :].set(x_rows)
    # TODO(synk): a polyphase split over oh % stride would also remove the H zero-dilation
    # (its ~stride x HBM/MAC overhead); kept simple here.

    # --- Toeplitz weight over W:
    #   R[khf, iw*Cin+ci, ow*Cout+co] = weight[ci, co, KH-1-khf, kw]
    #     iff  ow + p == iw*s + kw*d  with 0 <= kw < KW   (else 0)
    iw_idx = jnp.arange(W)[:, None]
    ow_idx = jnp.arange(OW)[None, :]
    t = ow_idx + p - iw_idx * s                                  # (W, OW)
    valid = (t >= 0) & (t < KW * d) & (t % d == 0)
    kw_tap = jnp.where(valid, t // d, 0)
    w_g = weight_ioxy[:, :, :, kw_tap]                           # (Cin, Cout, KH, W, OW)
    w_g = jnp.where(valid[None, None, None], w_g, 0.0)
    w_g = w_g[:, :, ::-1, :, :]                                  # flip kh -> khf
    R = jnp.transpose(w_g, (2, 3, 0, 4, 1)).reshape(KH, WC, OWC)
    R = jnp.pad(R, ((0, 0), (0, 0), (0, OWC_pad - OWC))).astype(compute_dtype)

    # --- bias, lane-packed like the output; fused into the kernel epilogue
    b_packed = jnp.pad(jnp.tile(bias.astype(jnp.float32), OW), (0, OWC_pad - OWC))
    b_packed = b_packed.reshape(1, OWC_pad)

    out_dtype = x_nchw.dtype
    in_item = jnp.dtype(compute_dtype).itemsize
    flops = 2 * N * OH_pad * KH * WC * OWC_pad
    bytes_accessed = ((N * Hp * WC + KH * WC * OWC_pad + OWC_pad) * in_item
                      + N * OH_pad * OWC_pad * jnp.dtype(out_dtype).itemsize)

    grid = (N, OH_pad // TOH)
    kernel = functools.partial(_qconv_transpose_kernel, KH=KH, dh=d, TOH=TOH)

    out_packed = pl.pallas_call(
        kernel,
        out_shape=jax.ShapeDtypeStruct((N, OH_pad, OWC_pad), out_dtype),
        grid=grid,
        in_specs=[
            # Whole folded image per batch element (fetched once per n, reused over i).
            # TODO(synk): for very tall images, halo-tile the rows (manual DMA) so the
            # resident input block stays bounded on v7x's 64 MiB VMEM.
            pl.BlockSpec((None, Hp, WC), lambda n, i: (n, 0, 0)),
            # Grid-invariant Toeplitz weight and packed bias.
            # TODO(synk): pipeline_mode=pl.Buffered(1) would drop their second buffer.
            pl.BlockSpec((KH, WC, OWC_pad), lambda n, i: (0, 0, 0)),
            pl.BlockSpec((1, OWC_pad), lambda n, i: (0, 0)),
        ],
        out_specs=pl.BlockSpec((None, TOH, OWC_pad), lambda n, i: (n, i, 0)),
        compiler_params=pltpu.CompilerParams(
            dimension_semantics=("parallel", "parallel"),
            vmem_limit_bytes=_vmem_limit_bytes(),
        ),
        cost_estimate=pl.CostEstimate(
            flops=int(flops), transcendentals=0, bytes_accessed=int(bytes_accessed)),
    )(xp, R, b_packed)

    # Un-pack lanes -> (N, OH, OW, Cout); slices are no-ops when no padding was added.
    out = out_packed[:, :OH, :OWC].reshape(N, OH, OW, Cout)
    return jnp.transpose(out, (0, 3, 1, 2))


# -----------------------------------------------------------------------------
# Demo / self-check
# -----------------------------------------------------------------------------
if __name__ == "__main__":
    key = jax.random.PRNGKey(0)
    kx, kw_ = jax.random.split(key)

    # Module config: QAutogradConvTranspose2d(in_channels=2, out_channels=2,
    #   kernel_size=3, stride=2, padding=1, output_padding=1, bias=True, spinor=False)
    in_q, out_q, KS = 2, 2, 3
    stride, padding, output_padding, dilation = 2, 1, 1, 1
    N, H, W = 2, 16, 16

    # Quaternion weight -> real representation (4*in_q, 4*out_q, KH, KW); bias zeros.
    r, i, j, k = quaternion_conv_init(kw_, in_q, out_q, KS, KS)
    weight = quaternion_real_repr(r, i, j, k).astype(jnp.float32)
    Cin, Cout = 4 * in_q, 4 * out_q
    bias = jnp.zeros((Cout,), jnp.float32)   # module initializes bias to zeros

    # Input x: (N, 4*in_q, H, W) NCHW, like the PyTorch module expects.
    x = jax.random.normal(kx, (N, Cin, H, W), dtype=jnp.float32)

    out = qconv_transpose2d_forward(
        x, weight, bias, stride=stride, padding=padding,
        output_padding=output_padding, dilation=dilation)
    out = jax.block_until_ready(out)

    # Silent correctness check: conv_transpose2d is the transpose (vjp w.r.t. the
    # input) of the corresponding forward conv2d with the same weight/params.
    OH = (H - 1) * stride - 2 * padding + dilation * (KS - 1) + output_padding + 1
    OW = (W - 1) * stride - 2 * padding + dilation * (KS - 1) + output_padding + 1

    def fwd_conv(z):  # (N, Cout, OH, OW) -> (N, Cin, H, W)
        return jax.lax.conv_general_dilated(
            z, weight,
            window_strides=(stride, stride),
            padding=[(padding, padding), (padding, padding)],
            rhs_dilation=(dilation, dilation),
            dimension_numbers=("NCHW", "OIHW", "NCHW"),
            precision=jax.lax.Precision.HIGHEST)

    _, vjp_fn = jax.vjp(fwd_conv, jnp.zeros((N, Cout, OH, OW), jnp.float32))
    (ref,) = vjp_fn(x)
    ref = ref + bias[None, :, None, None]

    assert out.shape == (N, Cout, OH, OW) == ref.shape, (out.shape, ref.shape)
    err = float(jnp.max(jnp.abs(out - ref)))
    assert err < 5e-3, f"max abs err {err}"
    print("KERNEL_OK")
</pallas_src>

<mosaic_0001>
module attributes {stable_mosaic.version = 11 : i64} {
  func.func @_qconv_transpose_kernel(%arg0: i32, %arg1: i32, %arg2: memref<1x34x128xf32, #tpu.memory_space<vmem>>, %arg3: memref<3x128x256xf32, #tpu.memory_space<vmem>>, %arg4: memref<1x256xf32, #tpu.memory_space<vmem>>, %arg5: memref<1x32x256xf32, #tpu.memory_space<vmem>>) attributes {dimension_semantics = [#tpu.dimension_semantics<parallel>, #tpu.dimension_semantics<parallel>], iteration_bounds = array<i64: 2, 1>, scalar_prefetch = 0 : i64, scratch_operands = 0 : i64, tpu.core_type = #tpu.core_type<tc>, window_params = [{transform_indices = @transform_0, window_bounds = array<i64: 1, 34, 128>}, {pipeline_mode = #tpu.pipeline_mode<synchronous>, transform_indices = @transform_1, window_bounds = array<i64: 3, 128, 256>}, {pipeline_mode = #tpu.pipeline_mode<synchronous>, transform_indices = @transform_2, window_bounds = array<i64: 1, 256>}, {transform_indices = @transform_3, window_bounds = array<i64: 1, 32, 256>}]} {
    %c32_i32 = arith.constant 32 : i32
    %0 = arith.muli %arg1, %c32_i32 : i32
    %1 = tpu.assume_multiple %0, 32 : i32
    %cst = arith.constant 0.000000e+00 : f32
    %2 = vector.broadcast %cst : f32 to vector<32x256xf32>
    %c0_i32 = arith.constant 0 : i32
    %3 = arith.addi %1, %c0_i32 : i32
    %c0 = arith.constant 0 : index
    %4 = arith.index_cast %3 : i32 to index
    %c0_0 = arith.constant 0 : index
    %5 = vector.load %arg2[%c0, %4, %c0_0] : memref<1x34x128xf32, #tpu.memory_space<vmem>>, vector<1x32x128xf32>
    %6 = vector.shape_cast %5 : vector<1x32x128xf32> to vector<32x128xf32>
    %c0_1 = arith.constant 0 : index
    %c0_2 = arith.constant 0 : index
    %c0_3 = arith.constant 0 : index
    %7 = vector.load %arg3[%c0_1, %c0_2, %c0_3] : memref<3x128x256xf32, #tpu.memory_space<vmem>>, vector<1x128x256xf32>
    %8 = vector.shape_cast %7 : vector<1x128x256xf32> to vector<128x256xf32>
    %cst_4 = arith.constant dense<0.000000e+00> : vector<32x256xf32>
    %9 = tpu.matmul %6, %8, %cst_4 {dimension_numbers = #tpu.dot_dimension_numbers<[1], [0], [0], [1], [0, 0, 1, 1], [], []>} : vector<32x128xf32>, vector<128x256xf32>, vector<32x256xf32> -> vector<32x256xf32>
    %10 = arith.addf %2, %9 : vector<32x256xf32>
    %c1_i32 = arith.constant 1 : i32
    %11 = arith.addi %1, %c1_i32 : i32
    %c0_5 = arith.constant 0 : index
    %12 = arith.index_cast %11 : i32 to index
    %c0_6 = arith.constant 0 : index
    %13 = vector.load %arg2[%c0_5, %12, %c0_6] : memref<1x34x128xf32, #tpu.memory_space<vmem>>, vector<1x32x128xf32>
    %14 = vector.shape_cast %13 : vector<1x32x128xf32> to vector<32x128xf32>
    %c1 = arith.constant 1 : index
    %c0_7 = arith.constant 0 : index
    %c0_8 = arith.constant 0 : index
    %15 = vector.load %arg3[%c1, %c0_7, %c0_8] : memref<3x128x256xf32, #tpu.memory_space<vmem>>, vector<1x128x256xf32>
    %16 = vector.shape_cast %15 : vector<1x128x256xf32> to vector<128x256xf32>
    %cst_9 = arith.constant dense<0.000000e+00> : vector<32x256xf32>
    %17 = tpu.matmul %14, %16, %cst_9 {dimension_numbers = #tpu.dot_dimension_numbers<[1], [0], [0], [1], [0, 0, 1, 1], [], []>} : vector<32x128xf32>, vector<128x256xf32>, vector<32x256xf32> -> vector<32x256xf32>
    %18 = arith.addf %10, %17 : vector<32x256xf32>
    %c2_i32 = arith.constant 2 : i32
    %19 = arith.addi %1, %c2_i32 : i32
    %c0_10 = arith.constant 0 : index
    %20 = arith.index_cast %19 : i32 to index
    %c0_11 = arith.constant 0 : index
    %21 = vector.load %arg2[%c0_10, %20, %c0_11] : memref<1x34x128xf32, #tpu.memory_space<vmem>>, vector<1x32x128xf32>
    %22 = vector.shape_cast %21 : vector<1x32x128xf32> to vector<32x128xf32>
    %c2 = arith.constant 2 : index
    %c0_12 = arith.constant 0 : index
    %c0_13 = arith.constant 0 : index
    %23 = vector.load %arg3[%c2, %c0_12, %c0_13] : memref<3x128x256xf32, #tpu.memory_space<vmem>>, vector<1x128x256xf32>
    %24 = vector.shape_cast %23 : vector<1x128x256xf32> to vector<128x256xf32>
    %cst_14 = arith.constant dense<0.000000e+00> : vector<32x256xf32>
    %25 = tpu.matmul %22, %24, %cst_14 {dimension_numbers = #tpu.dot_dimension_numbers<[1], [0], [0], [1], [0, 0, 1, 1], [], []>} : vector<32x128xf32>, vector<128x256xf32>, vector<32x256xf32> -> vector<32x256xf32>
    %26 = arith.addf %18, %25 : vector<32x256xf32>
    %c0_15 = arith.constant 0 : index
    %c0_16 = arith.constant 0 : index
    %27 = vector.load %arg4[%c0_15, %c0_16] : memref<1x256xf32, #tpu.memory_space<vmem>>, vector<1x256xf32>
    %28 = vector.broadcast %27 : vector<1x256xf32> to vector<32x256xf32>
    %29 = arith.addf %26, %28 : vector<32x256xf32>
    %c0_17 = arith.constant 0 : index
    %c0_18 = arith.constant 0 : index
    %c0_19 = arith.constant 0 : index
    %30 = vector.load %arg5[%c0_17, %c0_18, %c0_19] : memref<1x32x256xf32, #tpu.memory_space<vmem>>, vector<1x32x256xf32>
    %31 = vector.shape_cast %30 : vector<1x32x256xf32> to vector<32x256xf32>
    %32 = vector.shape_cast %29 : vector<32x256xf32> to vector<1x32x256xf32>
    tpu.vector_store %arg5[%c0_17, %c0_18, %c0_19], %32 {strides = array<i32>} : memref<1x32x256xf32, #tpu.memory_space<vmem>>, vector<1x32x256xf32>,
    return
  }
  func.func @transform_0(%arg0: i32, %arg1: i32) -> (i32, i32, i32) {
    %c0_i32 = arith.constant 0 : i32
    %c0_i32_0 = arith.constant 0 : i32
    %c0_i32_1 = arith.constant 0 : i32
    return %arg0, %c0_i32, %c0_i32_0 : i32, i32, i32
  }
  func.func @transform_1(%arg0: i32, %arg1: i32) -> (i32, i32, i32) {
    %c0_i32 = arith.constant 0 : i32
    %c0_i32_0 = arith.constant 0 : i32
    %c0_i32_1 = arith.constant 0 : i32
    %c0_i32_2 = arith.constant 0 : i32
    return %c0_i32, %c0_i32_0, %c0_i32_1 : i32, i32, i32
  }
  func.func @transform_2(%arg0: i32, %arg1: i32) -> (i32, i32) {
    %c0_i32 = arith.constant 0 : i32
    %c0_i32_0 = arith.constant 0 : i32
    %c0_i32_1 = arith.constant 0 : i32
    return %c0_i32, %c0_i32_0 : i32, i32
  }
  func.func @transform_3(%arg0: i32, %arg1: i32) -> (i32, i32, i32) {
    %c0_i32 = arith.constant 0 : i32
    %c0_i32_0 = arith.constant 0 : i32
    return %arg0, %arg1, %c0_i32 : i32, i32, i32
  }
}

</mosaic_0001>

<llo_original>
// kernel: tile.8
$region0: #{tile.8}
  #allocation0 [shape = 's32[1]{0}', space=sflag, size = 0x4, scoped, tag = 'scoped memory for tile.8']
  %s0 = inlined_call_operand.vmem [shape: f32[8], index: 0, kind: input, shape index: {}]
  %s1 = inlined_call_operand.vmem [shape: f32[32,8], index: 1, kind: output, shape index: {}]
  // Predicated region
  $region2: #{tile.8} parent=0 // pred_check
    _
  $region3: #{tile.8} parent=0 // pred_check_branch
    %3 = sbr.rel (0) target = $region5
  $region4: #{tile.8} parent=0 // pred_region
    _
  $region5: #{tile.8} parent=0 // pred_fallthru
    _
  %v4 = vld [vmem:[%s0] ss:$0 sm:$0xff]
  %5 = vst [vmem:[%s1] sm:$0xff] %v4
  %s6 = scalar_lea.vmem %s1, 8
  %7 = vst [vmem:[%s6] sm:$0xff] %v4
  %s8 = scalar_lea.vmem %s1, 16
  %9 = vst [vmem:[%s8] sm:$0xff] %v4
  %s10 = scalar_lea.vmem %s1, 24
  %11 = vst [vmem:[%s10] sm:$0xff] %v4

// kernel: qconv_transpose2d_forward.1
$region0: #{qconv_transpose2d_forward.1}
  #allocation0 [shape = 'u32[]', space=smem, size = 0x4, offset = 0x4, fixed_abs, tag = 'smem constant byte address 0x4 - core index']
  #allocation1 [shape = 'u32[144,128]{1,0:T(1,128)}', space=vmem, size = 0x12000, scoped, tag = 'internal scratch']
  %s0 = inlined_call_operand.vmem [shape: f32[2,34,128], index: 0, kind: input, shape index: {}]
  %s1 = inlined_call_operand.vmem [shape: f32[3,128,256], index: 1, kind: input, shape index: {}]
  %s2 = inlined_call_operand.vmem [shape: f32[1,256], index: 2, kind: input, shape index: {}]
  %s3 = inlined_call_operand.vmem [shape: f32[2,32,256], index: 3, kind: output, shape index: {}]
  %s4 = sld [smem:[#allocation0]]
  $region45: #{qconv_transpose2d_forward.1} parent=0
    _
  %s6 = ssub.s32 1, %s4
  %s7 = scalar_select 0, %s6, %s4
  loop: start=0, step=1, limit=4
  $region2: #{qconv_transpose2d_forward.1} parent=0 // loop_pre_header
    _
  $region3: #{qconv_transpose2d_forward.1} parent=0 // loop_header
    %s9 = sphi 0, %s13
    %p10 = scmp.ge.s32.totalorder %s9, 4
    %s16 = sphi 0, %s28
    %s17 = sphi 0, %s24
    %s18 = sphi 0, %s16
    %s19 = sphi 0, %s17
    %s20 = sphi 0, %s18
    %s21 = sphi 0, %s19
    %s31 = sphi 0, %s33
    %s34 = sphi 0, %s31
    %s35 = sphi 0, %s34
    %s51 = sphi 0, %s35
    %s55 = sphi 0, %s55
    %s57 = sphi 0, %s55
    %s58 = sphi 0, %s57
    %s72 = sphi 0, %s58
    %s76 = sphi 0, %s76
    %s78 = sphi 0, %s76
    %s79 = sphi 0, %s78
    %s93 = sphi 0, %s79
    %s101 = sphi 0, %s103
    %s104 = sphi 0, %s101
    %s105 = sphi 0, %s104
    %s121 = sphi 0, %s105
  $region4: #{qconv_transpose2d_forward.1} parent=0 // loop_header_branch
    %12 = sbr.rel (%p10) target = $region8
  $region5: #{qconv_transpose2d_forward.1} parent=0 // loop_body
    %s14 = ssub.s32 %s9, 1
    %s15 = ssub.s32 %s9, 2
    %s22 = sadd.s32 1, %s17
    %p23 = scmp.ge.s32.totalorder %s22, 1
    %s24 = scalar_select %p23, 0, %s22
    %s25 = sadd.s32 1, %s16
    %s26 = scalar_select %p23, %s25, %s16
    %p27 = scmp.ge.s32.totalorder %s26, 2
    %s28 = scalar_select %p27, 0, %s26
    %s29 = ssub.s32 %s16, %s28
    %p30 = scmp.eq.s32.totalorder %s29, 0
    %s32 = sadd.s32 %s31, 1
    %s33 = scalar_select %p30, %s31, %s32
    %p36 = pneg %p30
    %p37 = scmp.eq.s32.totalorder %s9, 1
    %p38 = por %p36, %p37
    %p39 = scmp.ne.s32.totalorder %s31, %s34
    %p40 = scmp.eq.s32.totalorder %s9, 0
    %p41 = por %p39, %p40
    %p42 = scmp.ne.s32.totalorder %s31, %s34
    %p43 = scmp.eq.s32.totalorder %s14, 1
    %p44 = por %p42, %p43
    %p45 = scmp.ne.s32.totalorder %s34, %s35
    %p46 = scmp.eq.s32.totalorder %s14, 0
    %p47 = por %p45, %p46
    %p48 = scmp.ne.s32.totalorder %s34, %s35
    %p49 = scmp.eq.s32.totalorder %s15, 1
    %p50 = por %p48, %p49
    %p52 = scmp.ne.s32.totalorder %s35, %s51
    %p53 = scmp.eq.s32.totalorder %s15, 0
    %p54 = por %p52, %p53
    %s56 = sadd.s32 %s55, 1
    %p59 = scmp.eq.s32.totalorder %s9, 1
    %p60 = scmp.ne.s32.totalorder %s55, %s57
    %p61 = scmp.eq.s32.totalorder %s9, 0
    %p62 = por %p60, %p61
    %p63 = scmp.ne.s32.totalorder %s55, %s57
    %p64 = scmp.eq.s32.totalorder %s14, 1
    %p65 = por %p63, %p64
    %p66 = scmp.ne.s32.totalorder %s57, %s58
    %p67 = scmp.eq.s32.totalorder %s14, 0
    %p68 = por %p66, %p67
    %p69 = scmp.ne.s32.totalorder %s57, %s58
    %p70 = scmp.eq.s32.totalorder %s15, 1
    %p71 = por %p69, %p70
    %p73 = scmp.ne.s32.totalorder %s58, %s72
    %p74 = scmp.eq.s32.totalorder %s15, 0
    %p75 = por %p73, %p74
    %s77 = sadd.s32 %s76, 1
    %p80 = scmp.eq.s32.totalorder %s9, 1
    %p81 = scmp.ne.s32.totalorder %s76, %s78
    %p82 = scmp.eq.s32.totalorder %s9, 0
    %p83 = por %p81, %p82
    %p84 = scmp.ne.s32.totalorder %s76, %s78
    %p85 = scmp.eq.s32.totalorder %s14, 1
    %p86 = por %p84, %p85
    %p87 = scmp.ne.s32.totalorder %s78, %s79
    %p88 = scmp.eq.s32.totalorder %s14, 0
    %p89 = por %p87, %p88
    %p90 = scmp.ne.s32.totalorder %s78, %s79
    %p91 = scmp.eq.s32.totalorder %s15, 1
    %p92 = por %p90, %p91
    %p94 = scmp.ne.s32.totalorder %s79, %s93
    %p95 = scmp.eq.s32.totalorder %s15, 0
    %p96 = por %p94, %p95
    %s97 = ssub.s32 %s16, %s28
    %s98 = ssub.s32 %s17, %s24
    %s99 = sor.u32 %s97, %s98
    %p100 = scmp.eq.s32.totalorder %s99, 0
    %s102 = sadd.s32 %s101, 1
    %s103 = scalar_select %p100, %s101, %s102
    %p106 = pneg %p100
    %p107 = scmp.eq.s32.totalorder %s9, 1
    %p108 = por %p106, %p107
    %p109 = scmp.ne.s32.totalorder %s101, %s104
    %p110 = scmp.eq.s32.totalorder %s9, 0
    %p111 = por %p109, %p110
    %p112 = scmp.ne.s32.totalorder %s101, %s104
    %p113 = scmp.eq.s32.totalorder %s14, 1
    %p114 = por %p112, %p113
    %p115 = scmp.ne.s32.totalorder %s104, %s105
    %p116 = scmp.eq.s32.totalorder %s14, 0
    %p117 = por %p115, %p116
    %p118 = scmp.ne.s32.totalorder %s104, %s105
    %p119 = scmp.eq.s32.totalorder %s15, 1
    %p120 = por %p118, %p119
    %p122 = scmp.ne.s32.totalorder %s105, %s121
    %p123 = scmp.eq.s32.totalorder %s15, 0
    %p124 = por %p122, %p123
    %p125 = scmp.le.s32.totalorder 1, %s9
    %p126 = scmp.lt.s32.totalorder %s9, 3
    %p127 = pnand %p125, %p126
    %p128 = pneg %p127
    // Predicated region
    $region9: #{qconv_transpose2d_forward.1} parent=5 // pred_check
      _
    $region10: #{qconv_transpose2d_forward.1} parent=5 // pred_check_branch
      %130 = sbr.rel (%p127) target = $region12
    $region11: #{qconv_transpose2d_forward.1} parent=5 // pred_region
      %s131 = ssub.s32 %s9, 1
      // Predicated region
      $region13: #{qconv_transpose2d_forward.1} parent=11 // pred_check
        %p132 = pneg %p68
      $region14: #{qconv_transpose2d_forward.1} parent=11 // pred_check_branch
        %134 = sbr.rel (%p132) target = $region16
      $region15: #{qconv_transpose2d_forward.1} parent=11 // pred_region
        _
      $region16: #{qconv_transpose2d_forward.1} parent=11 // pred_fallthru
        _
      // Predicated region
      $region17: #{qconv_transpose2d_forward.1} parent=11 // pred_check
        %p135 = pneg %p89
      $region18: #{qconv_transpose2d_forward.1} parent=11 // pred_check_branch
        %137 = sbr.rel (%p135) target = $region20
      $region19: #{qconv_transpose2d_forward.1} parent=11 // pred_region
        _
      $region20: #{qconv_transpose2d_forward.1} parent=11 // pred_fallthru
        _
    $region12: #{qconv_transpose2d_forward.1} parent=5 // pred_fallthru
      _
    %p138 = scmp.lt.s32.totalorder %s9, 2
    // Predicated region
    $region21: #{qconv_transpose2d_forward.1} parent=5 // pred_check
      %p139 = pneg %p138
    $region22: #{qconv_transpose2d_forward.1} parent=5 // pred_check_branch
      %141 = sbr.rel (%p139) target = $region24
    $region23: #{qconv_transpose2d_forward.1} parent=5 // pred_region
      // Predicated region
      $region25: #{qconv_transpose2d_forward.1} parent=23 // pred_check
        %p142 = pneg %p41
      $region26: #{qconv_transpose2d_forward.1} parent=23 // pred_check_branch
        %144 = sbr.rel (%p142) target = $region28
      $region27: #{qconv_transpose2d_forward.1} parent=23 // pred_region
        %p145 = scmp.lt.s32.totalorder %s16, 1
        %s146 = scalar_select %p145, %s16, 1
        %s147 = smul.addr %s146, 5
        %s148 = smul.addr %s147, 8
        %s149 = scalar_lea.vmem %s0, %s148
      $region28: #{qconv_transpose2d_forward.1} parent=23 // pred_fallthru
        _
    $region24: #{qconv_transpose2d_forward.1} parent=5 // pred_fallthru
      _
    %p150 = scmp.le.s32.totalorder 1, %s9
    %p151 = scmp.lt.s32.totalorder %s9, 3
    %p152 = pnand %p150, %p151
    %p153 = pneg %p152
    // Predicated region
    $region29: #{qconv_transpose2d_forward.1} parent=5 // pred_check
      _
    $region30: #{qconv_transpose2d_forward.1} parent=5 // pred_check_branch
      %155 = sbr.rel (%p152) target = $region32
    $region31: #{qconv_transpose2d_forward.1} parent=5 // pred_region
      %s156 = ssub.s32 %s9, 1
      %p157 = scmp.lt.s32.totalorder %s18, 1
      %s158 = scalar_select %p157, %s18, 1
      %s159 = smul.addr %s158, 5
      %s160 = smul.addr %s159, 8
      %s161 = scalar_lea.vmem %s0, %s160
      %p162 = pneg %p47
      %p163 = pneg %p44
      %p164 = pneg %p68
      %p165 = pneg %p65
      %p166 = pneg %p89
      %p167 = pneg %p86
      %p168 = pneg %p117
      %p169 = pneg %p114
      %s170 = smul.u32 4, %s19
      %p171 = scmp.lt.s32.totalorder %s18, 1
      %s172 = scalar_select %p171, %s18, 1
      %p173 = scmp.lt.s32.totalorder %s170, 3
      %s174 = scalar_select %p173, %s170, 3
      %s175 = smul.addr %s174, 2
      %s176 = smul.addr %s172, 8
      %s177 = sadd.s32 %s175, %s176
      %s178 = smul.addr %s177, 8
      %s179 = scalar_lea.vmem %s3, %s178
      %p180 = scmp.lt.s32.totalorder %s18, 1
      %s181 = scalar_select %p180, %s18, 1
      %s182 = smul.addr %s181, 5
      %s183 = smul.addr %s182, 8
      %s184 = scalar_lea.vmem %s0, %s183
      %s185 = smul.u32 4, %s19
      %p186 = scmp.lt.s32.totalorder %s18, 1
      %s187 = scalar_select %p186, %s18, 1
      %p188 = scmp.lt.s32.totalorder %s185, 3
      %s189 = scalar_select %p188, %s185, 3
      %s190 = smul.addr %s189, 2
      %s191 = smul.addr %s187, 8
      %s192 = sadd.s32 %s190, %s191
      %s193 = smul.addr %s192, 8
      %s194 = scalar_lea.vmem %s3, %s193
      %s195 = smul.u32 4, %s19
      %s196 = smul.u32 %s19, 32
      %s197 = scalar_lea.vmem %s184, %s196
      %v198 = vld [vmem:[%s197] sm:$0xff]
      %v199 = vld [vmem:[%s197 + $0x8] sm:$0xff]
      %v200 = vld [vmem:[%s197 + $0x10] sm:$0xff]
      %v201 = vld [vmem:[%s197 + $0x18] sm:$0xff]
      %v202 = vld [vmem:[%s1] sm:$0xff]
      %v203 = vld [vmem:[%s1 + $0x8] sm:$0xff]
      %v204 = vld [vmem:[%s1 + $0x10] sm:$0xff]
      %v205 = vld [vmem:[%s1 + $0x18] sm:$0xff]
      %v206 = vld [vmem:[%s1 + $0x20] sm:$0xff]
      %v207 = vld [vmem:[%s1 + $0x28] sm:$0xff]
      %v208 = vld [vmem:[%s1 + $0x30] sm:$0xff]
      %v209 = vld [vmem:[%s1 + $0x38] sm:$0xff]
      %v210 = vld [vmem:[%s1 + $0x40] sm:$0xff]
      %v211 = vld [vmem:[%s1 + $0x48] sm:$0xff]
      %v212 = vld [vmem:[%s1 + $0x50] sm:$0xff]
      %v213 = vld [vmem:[%s1 + $0x58] sm:$0xff]
      %v214 = vld [vmem:[%s1 + $0x60] sm:$0xff]
      %v215 = vld [vmem:[%s1 + $0x68] sm:$0xff]
      %v216 = vld [vmem:[%s1 + $0x70] sm:$0xff]
      %v217 = vld [vmem:[%s1 + $0x78] sm:$0xff]
      %v218 = vld [vmem:[%s1 + $0x80] sm:$0xff]
      %v219 = vld [vmem:[%s1 + $0x88] sm:$0xff]
      %v220 = vld [vmem:[%s1 + $0x90] sm:$0xff]
      %v221 = vld [vmem:[%s1 + $0x98] sm:$0xff]
      %v222 = vld [vmem:[%s1 + $0xa0] sm:$0xff]
      %v223 = vld [vmem:[%s1 + $0xa8] sm:$0xff]
      %v224 = vld [vmem:[%s1 + $0xb0] sm:$0xff]
      %v225 = vld [vmem:[%s1 + $0xb8] sm:$0xff]
      %v226 = vld [vmem:[%s1 + $0xc0] sm:$0xff]
      %v227 = vld [vmem:[%s1 + $0xc8] sm:$0xff]
      %v228 = vld [vmem:[%s1 + $0xd0] sm:$0xff]
      %v229 = vld [vmem:[%s1 + $0xd8] sm:$0xff]
      %v230 = vld [vmem:[%s1 + $0xe0] sm:$0xff]
      %v231 = vld [vmem:[%s1 + $0xe8] sm:$0xff]
      %v232 = vld [vmem:[%s1 + $0xf0] sm:$0xff]
      %v233 = vld [vmem:[%s1 + $0xf8] sm:$0xff]
      %s234 = sadd.s32 %s196, 1
      %s235 = scalar_lea.vmem %s184, %s234
      %v236 = vld [vmem:[%s235] sm:$0xff]
      %v237 = vld [vmem:[%s235 + $0x8] sm:$0xff]
      %v238 = vld [vmem:[%s235 + $0x10] sm:$0xff]
      %v239 = vld [vmem:[%s235 + $0x18] sm:$0xff]
      %s240 = scalar_lea.vmem %s1, 256
      %v241 = vld [vmem:[%s240] sm:$0xff]
      %v242 = vld [vmem:[%s240 + $0x8] sm:$0xff]
      %v243 = vld [vmem:[%s240 + $0x10] sm:$0xff]
      %v244 = vld [vmem:[%s240 + $0x18] sm:$0xff]
      %v245 = vld [vmem:[%s240 + $0x20] sm:$0xff]
      %v246 = vld [vmem:[%s240 + $0x28] sm:$0xff]
      %v247 = vld [vmem:[%s240 + $0x30] sm:$0xff]
      %v248 = vld [vmem:[%s240 + $0x38] sm:$0xff]
      %v249 = vld [vmem:[%s240 + $0x40] sm:$0xff]
      %v250 = vld [vmem:[%s240 + $0x48] sm:$0xff]
      %v251 = vld [vmem:[%s240 + $0x50] sm:$0xff]
      %v252 = vld [vmem:[%s240 + $0x58] sm:$0xff]
      %v253 = vld [vmem:[%s240 + $0x60] sm:$0xff]
      %v254 = vld [vmem:[%s240 + $0x68] sm:$0xff]
      %v255 = vld [vmem:[%s240 + $0x70] sm:$0xff]
      %v256 = vld [vmem:[%s240 + $0x78] sm:$0xff]
      %v257 = vld [vmem:[%s240 + $0x80] sm:$0xff]
      %v258 = vld [vmem:[%s240 + $0x88] sm:$0xff]
      %v259 = vld [vmem:[%s240 + $0x90] sm:$0xff]
      %v260 = vld [vmem:[%s240 + $0x98] sm:$0xff]
      %v261 = vld [vmem:[%s240 + $0xa0] sm:$0xff]
      %v262 = vld [vmem:[%s240 + $0xa8] sm:$0xff]
      %v263 = vld [vmem:[%s240 + $0xb0] sm:$0xff]
      %v264 = vld [vmem:[%s240 + $0xb8] sm:$0xff]
      %v265 = vld [vmem:[%s240 + $0xc0] sm:$0xff]
      %v266 = vld [vmem:[%s240 + $0xc8] sm:$0xff]
      %v267 = vld [vmem:[%s240 + $0xd0] sm:$0xff]
      %v268 = vld [vmem:[%s240 + $0xd8] sm:$0xff]
      %v269 = vld [vmem:[%s240 + $0xe0] sm:$0xff]
      %v270 = vld [vmem:[%s240 + $0xe8] sm:$0xff]
      %v271 = vld [vmem:[%s240 + $0xf0] sm:$0xff]
      %v272 = vld [vmem:[%s240 + $0xf8] sm:$0xff]
      %273 = vmatprep.subr.mxu0 %v242
      %274 = vmatpush1.msra.mxu0 %v241
      %275 = vmatprep.subr.mxu0 %v244
      %276 = vmatpush1.msra.mxu0 %v243
      %277 = vmatprep.subr.mxu0 %v246
      %278 = vmatpush1.msra.mxu0 %v245
      %279 = vmatprep.subr.mxu0 %v248
      %280 = vmatpush1.msra.mxu0 %v247
      %281 = vmatprep.subr.mxu0 %v250
      %282 = vmatpush1.msra.mxu0 %v249
      %283 = vmatprep.subr.mxu0 %v252
      %284 = vmatpush1.msra.mxu0 %v251
      %285 = vmatprep.subr.mxu0 %v254
      %286 = vmatpush1.msra.mxu0 %v253
      %287 = vmatprep.subr.mxu0 %v256
      %288 = vmatpush1.msra.mxu0 %v255
      %289 = vmatprep.subr.mxu0 %v258
      %290 = vmatpush1.msra.mxu0 %v257
      %291 = vmatprep.subr.mxu0 %v260
      %292 = vmatpush1.msra.mxu0 %v259
      %293 = vmatprep.subr.mxu0 %v262
      %294 = vmatpush1.msra.mxu0 %v261
      %295 = vmatprep.subr.mxu0 %v264
      %296 = vmatpush1.msra.mxu0 %v263
      %297 = vmatprep.subr.mxu0 %v266
      %298 = vmatpush1.msra.mxu0 %v265
      %299 = vmatprep.subr.mxu0 %v268
      %300 = vmatpush1.msra.mxu0 %v267
      %301 = vmatprep.subr.mxu0 %v270
      %302 = vmatpush1.msra.mxu0 %v269
      %303 = vmatprep.subr.mxu0 %v272
      %304 = vmatpush1.msra.mxu0 %v271
      %305 = vmatprep.subr.mxu0 0.0
      %306 = vmatpush1.msra.mxu0 0.0
      %307 = vmatprep.subr.mxu0 0.0
      %308 = vmatpush1.msra.mxu0 0.0
      %309 = vmatprep.subr.mxu0 0.0
      %310 = vmatpush1.msra.mxu0 0.0
      %311 = vmatprep.subr.mxu0 0.0
      %312 = vmatpush1.msra.mxu0 0.0
      %313 = vmatprep.subr.mxu0 0.0
      %314 = vmatpush1.msra.mxu0 0.0
      %315 = vmatprep.subr.mxu0 0.0
      %316 = vmatpush1.msra.mxu0 0.0
      %317 = vmatprep.subr.mxu0 0.0
      %318 = vmatpush1.msra.mxu0 0.0
      %319 = vmatprep.subr.mxu0 0.0
      %320 = vmatpush1.msra.mxu0 0.0
      %321 = vmatprep.subr.mxu0 0.0
      %322 = vmatpush1.msra.mxu0 0.0
      %323 = vmatprep.subr.mxu0 0.0
      %324 = vmatpush1.msra.mxu0 0.0
      %325 = vmatprep.subr.mxu0 0.0
      %326 = vmatpush1.msra.mxu0 0.0
      %327 = vmatprep.subr.mxu0 0.0
      %328 = vmatpush1.msra.mxu0 0.0
      %329 = vmatprep.subr.mxu0 0.0
      %330 = vmatpush1.msra.mxu0 0.0
      %331 = vmatprep.subr.mxu0 0.0
      %332 = vmatpush1.msra.mxu0 0.0
      %333 = vmatprep.subr.mxu0 0.0
      %334 = vmatpush1.msra.mxu0 0.0
      %335 = vmatprep.subr.mxu0 0.0
      %336 = vmatpush1.msra.mxu0 0.0
      %337 = vmatprep.mubr.f32.mxu0 0.0
      %338 = vmatmul.mubr.f32.gmra.mrb[0].mxu0 %v236
      %v339 = vpop.f32.mrb[0].mxu0
      %v340 = vadd.f32 0.0, %v339
      %v341 = vpop.f32.mrb[0].mxu0
      %v342 = vadd.f32 0.0, %v341
      %343 = vmatprep.mubr.f32.mxu0 0.0
      %344 = vmatmul.mubr.f32.gmra.mrb[0].mxu0 %v237
      %v345 = vpop.f32.mrb[0].mxu0
      %v346 = vadd.f32 0.0, %v345
      %v347 = vpop.f32.mrb[0].mxu0
      %v348 = vadd.f32 0.0, %v347
      %349 = vmatprep.mubr.f32.mxu0 0.0
      %350 = vmatmul.mubr.f32.gmra.mrb[0].mxu0 %v238
      %v351 = vpop.f32.mrb[0].mxu0
      %v352 = vadd.f32 0.0, %v351
      %v353 = vpop.f32.mrb[0].mxu0
      %v354 = vadd.f32 0.0, %v353
      %355 = vmatprep.mubr.f32.mxu0 0.0
      %356 = vmatmul.mubr.f32.gmra.mrb[0].mxu0 %v239
      %v357 = vpop.f32.mrb[0].mxu0
      %v358 = vadd.f32 0.0, %v357
      %v359 = vpop.f32.mrb[0].mxu0
      %v360 = vadd.f32 0.0, %v359
      %361 = vdwg.mxu0
      %362 = vmatprep.subr.mxu0 %v203
      %363 = vmatpush1.msra.mxu0 %v202
      %364 = vmatprep.subr.mxu0 %v205
      %365 = vmatpush1.msra.mxu0 %v204
      %366 = vmatprep.subr.mxu0 %v207
      %367 = vmatpush1.msra.mxu0 %v206
      %368 = vmatprep.subr.mxu0 %v209
      %369 = vmatpush1.msra.mxu0 %v208
      %370 = vmatprep.subr.mxu0 %v211
      %371 = vmatpush1.msra.mxu0 %v210
      %372 = vmatprep.subr.mxu0 %v213
      %373 = vmatpush1.msra.mxu0 %v212
      %374 = vmatprep.subr.mxu0 %v215
      %375 = vmatpush1.msra.mxu0 %v214
      %376 = vmatprep.subr.mxu0 %v217
      %377 = vmatpush1.msra.mxu0 %v216
      %378 = vmatprep.subr.mxu0 %v219
      %379 = vmatpush1.msra.mxu0 %v218
      %380 = vmatprep.subr.mxu0 %v221
      %381 = vmatpush1.msra.mxu0 %v220
      %382 = vmatprep.subr.mxu0 %v223
      %383 = vmatpush1.msra.mxu0 %v222
      %384 = vmatprep.subr.mxu0 %v225
      %385 = vmatpush1.msra.mxu0 %v224
      %386 = vmatprep.subr.mxu0 %v227
      %387 = vmatpush1.msra.mxu0 %v226
      %388 = vmatprep.subr.mxu0 %v229
      %389 = vmatpush1.msra.mxu0 %v228
      %390 = vmatprep.subr.mxu0 %v231
      %391 = vmatpush1.msra.mxu0 %v230
      %392 = vmatprep.subr.mxu0 %v233
      %393 = vmatpush1.msra.mxu0 %v232
      %394 = vmatprep.subr.mxu0 0.0
      %395 = vmatpush1.msra.mxu0 0.0
      %396 = vmatprep.subr.mxu0 0.0
      %397 = vmatpush1.msra.mxu0 0.0
      %398 = vmatprep.subr.mxu0 0.0
      %399 = vmatpush1.msra.mxu0 0.0
      %400 = vmatprep.subr.mxu0 0.0
      %401 = vmatpush1.msra.mxu0 0.0
      %402 = vmatprep.subr.mxu0 0.0
      %403 = vmatpush1.msra.mxu0 0.0
      %404 = vmatprep.subr.mxu0 0.0
      %405 = vmatpush1.msra.mxu0 0.0
      %406 = vmatprep.subr.mxu0 0.0
      %407 = vmatpush1.msra.mxu0 0.0
      %408 = vmatprep.subr.mxu0 0.0
      %409 = vmatpush1.msra.mxu0 0.0
      %410 = vmatprep.subr.mxu0 0.0
      %411 = vmatpush1.msra.mxu0 0.0
      %412 = vmatprep.subr.mxu0 0.0
      %413 = vmatpush1.msra.mxu0 0.0
      %414 = vmatprep.subr.mxu0 0.0
      %415 = vmatpush1.msra.mxu0 0.0
      %416 = vmatprep.subr.mxu0 0.0
      %417 = vmatpush1.msra.mxu0 0.0
      %418 = vmatprep.subr.mxu0 0.0
      %419 = vmatpush1.msra.mxu0 0.0
      %420 = vmatprep.subr.mxu0 0.0
      %421 = vmatpush1.msra.mxu0 0.0
      %422 = vmatprep.subr.mxu0 0.0
      %423 = vmatpush1.msra.mxu0 0.0
      %424 = vmatprep.subr.mxu0 0.0
      %425 = vmatpush1.msra.mxu0 0.0
      %426 = vmatprep.mubr.f32.mxu0 0.0
      %427 = vmatmul.mubr.f32.gmra.mrb[0].mxu0 %v198
      %v428 = vpop.f32.mrb[0].mxu0
      %v429 = vadd.f32 %v340, %v428
      %v430 = vpop.f32.mrb[0].mxu0
      %v431 = vadd.f32 %v342, %v430
      %432 = vmatprep.mubr.f32.mxu0 0.0
      %433 = vmatmul.mubr.f32.gmra.mrb[0].mxu0 %v199
      %v434 = vpop.f32.mrb[0].mxu0
      %v435 = vadd.f32 %v346, %v434
      %v436 = vpop.f32.mrb[0].mxu0
      %v437 = vadd.f32 %v348, %v436
      %438 = vmatprep.mubr.f32.mxu0 0.0
      %439 = vmatmul.mubr.f32.gmra.mrb[0].mxu0 %v200
      %v440 = vpop.f32.mrb[0].mxu0
      %v441 = vadd.f32 %v352, %v440
      %v442 = vpop.f32.mrb[0].mxu0
      %v443 = vadd.f32 %v354, %v442
      %444 = vmatprep.mubr.f32.mxu0 0.0
      %445 = vmatmul.mubr.f32.gmra.mrb[0].mxu0 %v201
      %v446 = vpop.f32.mrb[0].mxu0
      %v447 = vadd.f32 %v358, %v446
      %v448 = vpop.f32.mrb[0].mxu0
      %v449 = vadd.f32 %v360, %v448
      %450 = vdwg.mxu0
      %s451 = sadd.s32 %s196, 2
      %s452 = scalar_lea.vmem %s184, %s451
      %v453 = vld [vmem:[%s452] sm:$0xff]
      %v454 = vld [vmem:[%s452 + $0x8] sm:$0xff]
      %v455 = vld [vmem:[%s452 + $0x10] sm:$0xff]
      %v456 = vld [vmem:[%s452 + $0x18] sm:$0xff]
      %s457 = scalar_lea.vmem %s1, 512
      %v458 = vld [vmem:[%s457] sm:$0xff]
      %v459 = vld [vmem:[%s457 + $0x8] sm:$0xff]
      %v460 = vld [vmem:[%s457 + $0x10] sm:$0xff]
      %v461 = vld [vmem:[%s457 + $0x18] sm:$0xff]
      %v462 = vld [vmem:[%s457 + $0x20] sm:$0xff]
      %v463 = vld [vmem:[%s457 + $0x28] sm:$0xff]
      %v464 = vld [vmem:[%s457 + $0x30] sm:$0xff]
      %v465 = vld [vmem:[%s457 + $0x38] sm:$0xff]
      %v466 = vld [vmem:[%s457 + $0x40] sm:$0xff]
      %v467 = vld [vmem:[%s457 + $0x48] sm:$0xff]
      %v468 = vld [vmem:[%s457 + $0x50] sm:$0xff]
      %v469 = vld [vmem:[%s457 + $0x58] sm:$0xff]
      %v470 = vld [vmem:[%s457 + $0x60] sm:$0xff]
      %v471 = vld [vmem:[%s457 + $0x68] sm:$0xff]
      %v472 = vld [vmem:[%s457 + $0x70] sm:$0xff]
      %v473 = vld [vmem:[%s457 + $0x78] sm:$0xff]
      %v474 = vld [vmem:[%s457 + $0x80] sm:$0xff]
      %v475 = vld [vmem:[%s457 + $0x88] sm:$0xff]
      %v476 = vld [vmem:[%s457 + $0x90] sm:$0xff]
      %v477 = vld [vmem:[%s457 + $0x98] sm:$0xff]
      %v478 = vld [vmem:[%s457 + $0xa0] sm:$0xff]
      %v479 = vld [vmem:[%s457 + $0xa8] sm:$0xff]
      %v480 = vld [vmem:[%s457 + $0xb0] sm:$0xff]
      %v481 = vld [vmem:[%s457 + $0xb8] sm:$0xff]
      %v482 = vld [vmem:[%s457 + $0xc0] sm:$0xff]
      %v483 = vld [vmem:[%s457 + $0xc8] sm:$0xff]
      %v484 = vld [vmem:[%s457 + $0xd0] sm:$0xff]
      %v485 = vld [vmem:[%s457 + $0xd8] sm:$0xff]
      %v486 = vld [vmem:[%s457 + $0xe0] sm:$0xff]
      %v487 = vld [vmem:[%s457 + $0xe8] sm:$0xff]
      %v488 = vld [vmem:[%s457 + $0xf0] sm:$0xff]
      %v489 = vld [vmem:[%s457 + $0xf8] sm:$0xff]
      %490 = vmatprep.subr.mxu0 %v459
      %491 = vmatpush1.msra.mxu0 %v458
      %492 = vmatprep.subr.mxu0 %v461
      %493 = vmatpush1.msra.mxu0 %v460
      %494 = vmatprep.subr.mxu0 %v463
      %495 = vmatpush1.msra.mxu0 %v462
      %496 = vmatprep.subr.mxu0 %v465
      %497 = vmatpush1.msra.mxu0 %v464
      %498 = vmatprep.subr.mxu0 %v467
      %499 = vmatpush1.msra.mxu0 %v466
      %500 = vmatprep.subr.mxu0 %v469
      %501 = vmatpush1.msra.mxu0 %v468
      %502 = vmatprep.subr.mxu0 %v471
      %503 = vmatpush1.msra.mxu0 %v470
      %504 = vmatprep.subr.mxu0 %v473
      %505 = vmatpush1.msra.mxu0 %v472
      %506 = vmatprep.subr.mxu0 %v475
      %507 = vmatpush1.msra.mxu0 %v474
      %508 = vmatprep.subr.mxu0 %v477
      %509 = vmatpush1.msra.mxu0 %v476
      %510 = vmatprep.subr.mxu0 %v479
      %511 = vmatpush1.msra.mxu0 %v478
      %512 = vmatprep.subr.mxu0 %v481
      %513 = vmatpush1.msra.mxu0 %v480
      %514 = vmatprep.subr.mxu0 %v483
      %515 = vmatpush1.msra.mxu0 %v482
      %516 = vmatprep.subr.mxu0 %v485
      %517 = vmatpush1.msra.mxu0 %v484
      %518 = vmatprep.subr.mxu0 %v487
      %519 = vmatpush1.msra.mxu0 %v486
      %520 = vmatprep.subr.mxu0 %v489
      %521 = vmatpush1.msra.mxu0 %v488
      %522 = vmatprep.subr.mxu0 0.0
      %523 = vmatpush1.msra.mxu0 0.0
      %524 = vmatprep.subr.mxu0 0.0
      %525 = vmatpush1.msra.mxu0 0.0
      %526 = vmatprep.subr.mxu0 0.0
      %527 = vmatpush1.msra.mxu0 0.0
      %528 = vmatprep.subr.mxu0 0.0
      %529 = vmatpush1.msra.mxu0 0.0
      %530 = vmatprep.subr.mxu0 0.0
      %531 = vmatpush1.msra.mxu0 0.0
      %532 = vmatprep.subr.mxu0 0.0
      %533 = vmatpush1.msra.mxu0 0.0
      %534 = vmatprep.subr.mxu0 0.0
      %535 = vmatpush1.msra.mxu0 0.0
      %536 = vmatprep.subr.mxu0 0.0
      %537 = vmatpush1.msra.mxu0 0.0
      %538 = vmatprep.subr.mxu0 0.0
      %539 = vmatpush1.msra.mxu0 0.0
      %540 = vmatprep.subr.mxu0 0.0
      %541 = vmatpush1.msra.mxu0 0.0
      %542 = vmatprep.subr.mxu0 0.0
      %543 = vmatpush1.msra.mxu0 0.0
      %544 = vmatprep.subr.mxu0 0.0
      %545 = vmatpush1.msra.mxu0 0.0
      %546 = vmatprep.subr.mxu0 0.0
      %547 = vmatpush1.msra.mxu0 0.0
      %548 = vmatprep.subr.mxu0 0.0
      %549 = vmatpush1.msra.mxu0 0.0
      %550 = vmatprep.subr.mxu0 0.0
      %551 = vmatpush1.msra.mxu0 0.0
      %552 = vmatprep.subr.mxu0 0.0
      %553 = vmatpush1.msra.mxu0 0.0
      %554 = vmatprep.mubr.f32.mxu0 0.0
      %555 = vmatmul.mubr.f32.gmra.mrb[0].mxu0 %v453
      %v556 = vpop.f32.mrb[0].mxu0
      %v557 = vadd.f32 0.0, %v556
      %v558 = vpop.f32.mrb[0].mxu0
      %v559 = vadd.f32 0.0, %v558
      %560 = vmatprep.mubr.f32.mxu0 0.0
      %561 = vmatmul.mubr.f32.gmra.mrb[0].mxu0 %v454
      %v562 = vpop.f32.mrb[0].mxu0
      %v563 = vadd.f32 0.0, %v562
      %v564 = vpop.f32.mrb[0].mxu0
      %v565 = vadd.f32 0.0, %v564
      %566 = vmatprep.mubr.f32.mxu0 0.0
      %567 = vmatmul.mubr.f32.gmra.mrb[0].mxu0 %v455
      %v568 = vpop.f32.mrb[0].mxu0
      %v569 = vadd.f32 0.0, %v568
      %v570 = vpop.f32.mrb[0].mxu0
      %v571 = vadd.f32 0.0, %v570
      %572 = vmatprep.mubr.f32.mxu0 0.0
      %573 = vmatmul.mubr.f32.gmra.mrb[0].mxu0 %v456
      %v574 = vpop.f32.mrb[0].mxu0
      %v575 = vadd.f32 0.0, %v574
      %v576 = vpop.f32.mrb[0].mxu0
      %v577 = vadd.f32 0.0, %v576
      %578 = vdwg.mxu0
      %v579 = vadd.f32 %v429, %v557
      %v580 = vadd.f32 %v431, %v559
      %v581 = vadd.f32 %v435, %v563
      %v582 = vadd.f32 %v437, %v565
      %v583 = vadd.f32 %v441, %v569
      %v584 = vadd.f32 %v443, %v571
      %v585 = vadd.f32 %v447, %v575
      %v586 = vadd.f32 %v449, %v577
      %v587 = vld [vmem:[%s2] sm:$0x3]
      %v589 = vlaneseq
      %v590 = vshrl.u32 %v589, 7
      %v591 = vsub.s32 0, %v590
      %v592 = vrot.slane %v587, %v591
      %v593 = vlaneseq
      %v594 = vshrl.u32 %v593, 7
      %v595 = vsub.s32 1, %v594
      %v596 = vrot.slane %v587, %v595
      %v599 = vadd.f32 %v579, %v592
      %v600 = vadd.f32 %v580, %v596
      %v601 = vadd.f32 %v581, %v592
      %v602 = vadd.f32 %v582, %v596
      %v603 = vadd.f32 %v583, %v592
      %v604 = vadd.f32 %v584, %v596
      %v605 = vadd.f32 %v585, %v592
      %v606 = vadd.f32 %v586, %v596
      %607 = vst [vmem:[%s194] sm:$0xff] %v599
      %608 = vst [vmem:[%s194 + $0x8] sm:$0xff] %v600
      %609 = vst [vmem:[%s194 + $0x10] sm:$0xff] %v601
      %610 = vst [vmem:[%s194 + $0x18] sm:$0xff] %v602
      %611 = vst [vmem:[%s194 + $0x20] sm:$0xff] %v603
      %612 = vst [vmem:[%s194 + $0x28] sm:$0xff] %v604
      %613 = vst [vmem:[%s194 + $0x30] sm:$0xff] %v605
      %614 = vst [vmem:[%s194 + $0x38] sm:$0xff] %v606
      %s615 = smul.u32 4, %s19
      %p616 = scmp.lt.s32.totalorder %s18, 1
      %s617 = scalar_select %p616, %s18, 1
      %p618 = scmp.lt.s32.totalorder %s615, 3
      %s619 = scalar_select %p618, %s615, 3
      %s620 = smul.addr %s619, 2
      %s621 = smul.addr %s617, 8
      %s622 = sadd.s32 %s620, %s621
      %s623 = smul.addr %s622, 8
      %s624 = scalar_lea.vmem %s3, %s623
      // Predicated region
      $region33: #{qconv_transpose2d_forward.1} parent=31 // pred_check
        %p625 = pneg %p114
      $region34: #{qconv_transpose2d_forward.1} parent=31 // pred_check_branch
        %627 = sbr.rel (%p625) target = $region36
      $region35: #{qconv_transpose2d_forward.1} parent=31 // pred_region
        %s628 = smul.u32 4, %s19
      $region36: #{qconv_transpose2d_forward.1} parent=31 // pred_fallthru
        _
    $region32: #{qconv_transpose2d_forward.1} parent=5 // pred_fallthru
      _
    %p629 = scmp.le.s32.totalorder 2, %s9
    // Predicated region
    $region37: #{qconv_transpose2d_forward.1} parent=5 // pred_check
      %p630 = pneg %p629
    $region38: #{qconv_transpose2d_forward.1} parent=5 // pred_check_branch
      %632 = sbr.rel (%p630) target = $region40
    $region39: #{qconv_transpose2d_forward.1} parent=5 // pred_region
      %s633 = ssub.s32 %s9, 2
      // Predicated region
      $region41: #{qconv_transpose2d_forward.1} parent=39 // pred_check
        %p634 = pneg %p120
      $region42: #{qconv_transpose2d_forward.1} parent=39 // pred_check_branch
        %636 = sbr.rel (%p634) target = $region44
      $region43: #{qconv_transpose2d_forward.1} parent=39 // pred_region
        %s637 = smul.u32 4, %s21
        %p638 = scmp.lt.s32.totalorder %s20, 1
        %s639 = scalar_select %p638, %s20, 1
        %p640 = scmp.lt.s32.totalorder %s637, 3
        %s641 = scalar_select %p640, %s637, 3
        %s642 = smul.addr %s641, 2
        %s643 = smul.addr %s639, 8
        %s644 = sadd.s32 %s642, %s643
        %s645 = smul.addr %s644, 8
        %s646 = scalar_lea.vmem %s3, %s645
      $region44: #{qconv_transpose2d_forward.1} parent=39 // pred_fallthru
        _
    $region40: #{qconv_transpose2d_forward.1} parent=5 // pred_fallthru
      _
  $region6: #{qconv_transpose2d_forward.1} parent=0 // loop_footer
    %s13 = sadd.s32 1, %s9
  $region7: #{qconv_transpose2d_forward.1} parent=0 // loop_footer_branch
    %8 = sbr.rel target = $region3
  $region8: #{qconv_transpose2d_forward.1} parent=0 // loop_exit
    _

</llo_original>
